<compile_context>
chip_gen: v7x
topology: tpu7x:2x2x1
jax: 0.10.0
libtpu: 0.0.40
codegen_flags: <defaults>
</compile_context>

<pallas_src>
import functools

import jax
import jax.numpy as jnp
from jax.experimental import pallas as pl
from jax.experimental.pallas import tpu as pltpu


def _mlp_residual_kernel(x_ref, w1_ref, b1_ref, w2_ref, b2_ref,
                         w3_ref, b3_ref, w4_ref, b4_ref, o_ref, *, x_length):
    """Fused 4x (Linear + ReLU) + residual add of x[:, :x_length]."""
    x = x_ref[...]                                              # (bm, in_dim) f32
    bf16 = jnp.bfloat16

    # bf16 MXU matmuls with f32 accumulation; bias + ReLU on the f32 accumulator.
    h = jnp.dot(x.astype(bf16), w1_ref[...],
                preferred_element_type=jnp.float32) + b1_ref[...]
    h = jnp.maximum(h, 0.0)                                     # (bm, 64)

    h = jnp.dot(h.astype(bf16), w2_ref[...],
                preferred_element_type=jnp.float32) + b2_ref[...]
    h = jnp.maximum(h, 0.0)                                     # (bm, 64)

    h = jnp.dot(h.astype(bf16), w3_ref[...],
                preferred_element_type=jnp.float32) + b3_ref[...]
    h = jnp.maximum(h, 0.0)                                     # (bm, 32)

    h = jnp.dot(h.astype(bf16), w4_ref[...],
                preferred_element_type=jnp.float32) + b4_ref[...]
    h = jnp.maximum(h, 0.0)                                     # (bm, x_length)

    # Residual uses the untouched f32 input (no bf16 rounding on this path).
    o_ref[...] = h + x[:, :x_length]


def _choose_block_m(B, block_m):
    """Clamp block_m to the (already 8-aligned) batch, keep it a multiple of 8,
    and keep >=2 grid steps when B allows so v7x's second TensorCore gets work."""
    bm = min(block_m, B)
    if bm == B:
        if B >= 16 and (B // 2) % 8 == 0:
            return B // 2                  # at least 2 parallel grid steps
        return bm
    return max(8, (bm // 8) * 8)


def block_x_forward(x, params, *, x_length, block_m=1024):
    """x: (B, x_length + a_length) float32. Returns (B, x_length) float32."""
    B, in_dim = x.shape
    w1, b1, w2, b2, w3, b3, w4, b4 = params

    # bf16 weights for the MXU (tiny; also halves their HBM/VMEM bytes).
    w1, w2, w3, w4 = (w.astype(jnp.bfloat16) for w in (w1, w2, w3, w4))
    b1, b2, b3, b4 = (b.astype(jnp.float32) for b in (b1, b2, b3, b4))

    # Pad the batch to a multiple of 8 so every row tile is sublane-aligned.
    B_pad = ((B + 7) // 8) * 8
    x_p = x if B_pad == B else jnp.pad(x, ((0, B_pad - B), (0, 0)))

    bm = _choose_block_m(B_pad, block_m)
    grid = (pl.cdiv(B_pad, bm),)

    # Replicated weight/bias blocks: constant block index -> fetched once, kept
    # resident in VMEM across grid steps.
    def rep(shape):
        return pl.BlockSpec(shape, lambda i: (0, 0))

    kernel = functools.partial(_mlp_residual_kernel, x_length=x_length)

    flops = 2 * B_pad * (in_dim * 64 + 64 * 64 + 64 * 32 + 32 * x_length) + B_pad * x_length
    bytes_accessed = (
        B_pad * in_dim * 4 + B_pad * x_length * 4
        + sum(int(w.size) * 2 for w in (w1, w2, w3, w4))
        + sum(int(b.size) * 4 for b in (b1, b2, b3, b4)))

    out = pl.pallas_call(
        kernel,
        out_shape=jax.ShapeDtypeStruct((B_pad, x_length), jnp.float32),
        grid=grid,
        in_specs=[
            pl.BlockSpec((bm, in_dim), lambda i: (i, 0)),        # x row tile
            rep(w1.shape), rep(b1.shape),
            rep(w2.shape), rep(b2.shape),
            rep(w3.shape), rep(b3.shape),
            rep(w4.shape), rep(b4.shape),
        ],
        out_specs=pl.BlockSpec((bm, x_length), lambda i: (i, 0)),
        compiler_params=pltpu.CompilerParams(
            dimension_semantics=("parallel",)),
        cost_estimate=pl.CostEstimate(
            flops=flops, transcendentals=0, bytes_accessed=bytes_accessed),
    )(x_p, w1, b1, w2, b2, w3, b3, w4, b4)

    return out if B_pad == B else out[:B]


def init_params(key, x_length, a_length):
    """Deterministic init mimicking nn.Linear (uniform +-1/sqrt(fan_in)).
    Weights returned as (in_features, out_features), f32."""
    dims = [(x_length + a_length, 64), (64, 64), (64, 32), (32, x_length)]
    params = []
    for i, (fan_in, fan_out) in enumerate(dims):
        kw, kb = jax.random.split(jax.random.fold_in(key, i))
        bound = 1.0 / jnp.sqrt(float(fan_in))
        w = jax.random.uniform(kw, (fan_in, fan_out), jnp.float32, -bound, bound)
        b = jax.random.uniform(kb, (1, fan_out), jnp.float32, -bound, bound)
        params += [w, b]
    return tuple(params)


def _ref_forward_bf16(x, params, x_length):
    """Pure-JAX reference matching the kernel's bf16-matmul / f32-accumulate math."""
    w1, b1, w2, b2, w3, b3, w4, b4 = params
    bf16 = jnp.bfloat16

    def lin(a, w, b):
        return jnp.dot(a.astype(bf16), w.astype(bf16),
                       preferred_element_type=jnp.float32) + b.astype(jnp.float32)

    h = jnp.maximum(lin(x, w1, b1), 0.0)
    h = jnp.maximum(lin(h, w2, b2), 0.0)
    h = jnp.maximum(lin(h, w3, b3), 0.0)
    h = jnp.maximum(lin(h, w4, b4), 0.0)
    return h + x[:, :x_length]


if __name__ == "__main__":
    x_length, a_length = 16, 16
    batch = 16   # small; wrapper still splits into 2 grid steps (megacore)

    key = jax.random.PRNGKey(0)
    kx, kp = jax.random.split(key)
    x = jax.random.normal(kx, (batch, x_length + a_length), jnp.float32)
    params = init_params(kp, x_length, a_length)

    out = block_x_forward(x, params, x_length=x_length)
    out = jax.block_until_ready(out)

    ref = _ref_forward_bf16(x, params, x_length)
    assert out.shape == (batch, x_length)
    assert jnp.allclose(out, ref, atol=1e-4, rtol=1e-4)

    print("KERNEL_OK")
</pallas_src>

<mosaic_0001>
module attributes {stable_mosaic.version = 11 : i64} {
  func.func @_mlp_residual_kernel(%arg0: i32, %arg1: memref<8x32xf32, #tpu.memory_space<vmem>>, %arg2: memref<32x64xbf16, #tpu.memory_space<vmem>>, %arg3: memref<1x64xf32, #tpu.memory_space<vmem>>, %arg4: memref<64x64xbf16, #tpu.memory_space<vmem>>, %arg5: memref<1x64xf32, #tpu.memory_space<vmem>>, %arg6: memref<64x32xbf16, #tpu.memory_space<vmem>>, %arg7: memref<1x32xf32, #tpu.memory_space<vmem>>, %arg8: memref<32x16xbf16, #tpu.memory_space<vmem>>, %arg9: memref<1x16xf32, #tpu.memory_space<vmem>>, %arg10: memref<8x16xf32, #tpu.memory_space<vmem>>) attributes {dimension_semantics = [#tpu.dimension_semantics<parallel>], iteration_bounds = array<i64: 2>, scalar_prefetch = 0 : i64, scratch_operands = 0 : i64, tpu.core_type = #tpu.core_type<tc>, window_params = [{transform_indices = @transform_0, window_bounds = array<i64: 8, 32>}, {pipeline_mode = #tpu.pipeline_mode<synchronous>, transform_indices = @transform_1, window_bounds = array<i64: 32, 64>}, {pipeline_mode = #tpu.pipeline_mode<synchronous>, transform_indices = @transform_2, window_bounds = array<i64: 1, 64>}, {pipeline_mode = #tpu.pipeline_mode<synchronous>, transform_indices = @transform_3, window_bounds = array<i64: 64, 64>}, {pipeline_mode = #tpu.pipeline_mode<synchronous>, transform_indices = @transform_4, window_bounds = array<i64: 1, 64>}, {pipeline_mode = #tpu.pipeline_mode<synchronous>, transform_indices = @transform_5, window_bounds = array<i64: 64, 32>}, {pipeline_mode = #tpu.pipeline_mode<synchronous>, transform_indices = @transform_6, window_bounds = array<i64: 1, 32>}, {pipeline_mode = #tpu.pipeline_mode<synchronous>, transform_indices = @transform_7, window_bounds = array<i64: 32, 16>}, {pipeline_mode = #tpu.pipeline_mode<synchronous>, transform_indices = @transform_8, window_bounds = array<i64: 1, 16>}, {transform_indices = @transform_9, window_bounds = array<i64: 8, 16>}]} {
    %c0 = arith.constant 0 : index
    %c0_0 = arith.constant 0 : index
    %0 = vector.load %arg1[%c0, %c0_0] : memref<8x32xf32, #tpu.memory_space<vmem>>, vector<8x32xf32>
    %1 = arith.truncf %0 : vector<8x32xf32> to vector<8x32xbf16>
    %c0_1 = arith.constant 0 : index
    %c0_2 = arith.constant 0 : index
    %2 = vector.load %arg2[%c0_1, %c0_2] : memref<32x64xbf16, #tpu.memory_space<vmem>>, vector<32x64xbf16>
    %cst = arith.constant dense<0.000000e+00> : vector<8x64xf32>
    %3 = tpu.matmul %1, %2, %cst {dimension_numbers = #tpu.dot_dimension_numbers<[1], [0], [0], [1], [0, 0, 1, 1], [], []>} : vector<8x32xbf16>, vector<32x64xbf16>, vector<8x64xf32> -> vector<8x64xf32>
    %c0_3 = arith.constant 0 : index
    %c0_4 = arith.constant 0 : index
    %4 = vector.load %arg3[%c0_3, %c0_4] : memref<1x64xf32, #tpu.memory_space<vmem>>, vector<1x64xf32>
    %5 = vector.broadcast %4 : vector<1x64xf32> to vector<8x64xf32>
    %6 = arith.addf %3, %5 : vector<8x64xf32>
    %cst_5 = arith.constant 0.000000e+00 : f32
    %7 = vector.broadcast %cst_5 : f32 to vector<8x64xf32>
    %8 = arith.maximumf %6, %7 : vector<8x64xf32>
    %9 = arith.truncf %8 : vector<8x64xf32> to vector<8x64xbf16>
    %c0_6 = arith.constant 0 : index
    %c0_7 = arith.constant 0 : index
    %10 = vector.load %arg4[%c0_6, %c0_7] : memref<64x64xbf16, #tpu.memory_space<vmem>>, vector<64x64xbf16>
    %cst_8 = arith.constant dense<0.000000e+00> : vector<8x64xf32>
    %11 = tpu.matmul %9, %10, %cst_8 {dimension_numbers = #tpu.dot_dimension_numbers<[1], [0], [0], [1], [0, 0, 1, 1], [], []>} : vector<8x64xbf16>, vector<64x64xbf16>, vector<8x64xf32> -> vector<8x64xf32>
    %c0_9 = arith.constant 0 : index
    %c0_10 = arith.constant 0 : index
    %12 = vector.load %arg5[%c0_9, %c0_10] : memref<1x64xf32, #tpu.memory_space<vmem>>, vector<1x64xf32>
    %13 = vector.broadcast %12 : vector<1x64xf32> to vector<8x64xf32>
    %14 = arith.addf %11, %13 : vector<8x64xf32>
    %cst_11 = arith.constant 0.000000e+00 : f32
    %15 = vector.broadcast %cst_11 : f32 to vector<8x64xf32>
    %16 = arith.maximumf %14, %15 : vector<8x64xf32>
    %17 = arith.truncf %16 : vector<8x64xf32> to vector<8x64xbf16>
    %c0_12 = arith.constant 0 : index
    %c0_13 = arith.constant 0 : index
    %18 = vector.load %arg6[%c0_12, %c0_13] : memref<64x32xbf16, #tpu.memory_space<vmem>>, vector<64x32xbf16>
    %cst_14 = arith.constant dense<0.000000e+00> : vector<8x32xf32>
    %19 = tpu.matmul %17, %18, %cst_14 {dimension_numbers = #tpu.dot_dimension_numbers<[1], [0], [0], [1], [0, 0, 1, 1], [], []>} : vector<8x64xbf16>, vector<64x32xbf16>, vector<8x32xf32> -> vector<8x32xf32>
    %c0_15 = arith.constant 0 : index
    %c0_16 = arith.constant 0 : index
    %20 = vector.load %arg7[%c0_15, %c0_16] : memref<1x32xf32, #tpu.memory_space<vmem>>, vector<1x32xf32>
    %21 = vector.broadcast %20 : vector<1x32xf32> to vector<8x32xf32>
    %22 = arith.addf %19, %21 : vector<8x32xf32>
    %cst_17 = arith.constant 0.000000e+00 : f32
    %23 = vector.broadcast %cst_17 : f32 to vector<8x32xf32>
    %24 = arith.maximumf %22, %23 : vector<8x32xf32>
    %25 = arith.truncf %24 : vector<8x32xf32> to vector<8x32xbf16>
    %c0_18 = arith.constant 0 : index
    %c0_19 = arith.constant 0 : index
    %26 = vector.load %arg8[%c0_18, %c0_19] : memref<32x16xbf16, #tpu.memory_space<vmem>>, vector<32x16xbf16>
    %cst_20 = arith.constant dense<0.000000e+00> : vector<8x16xf32>
    %27 = tpu.matmul %25, %26, %cst_20 {dimension_numbers = #tpu.dot_dimension_numbers<[1], [0], [0], [1], [0, 0, 1, 1], [], []>} : vector<8x32xbf16>, vector<32x16xbf16>, vector<8x16xf32> -> vector<8x16xf32>
    %c0_21 = arith.constant 0 : index
    %c0_22 = arith.constant 0 : index
    %28 = vector.load %arg9[%c0_21, %c0_22] : memref<1x16xf32, #tpu.memory_space<vmem>>, vector<1x16xf32>
    %29 = vector.broadcast %28 : vector<1x16xf32> to vector<8x16xf32>
    %30 = arith.addf %27, %29 : vector<8x16xf32>
    %cst_23 = arith.constant 0.000000e+00 : f32
    %31 = vector.broadcast %cst_23 : f32 to vector<8x16xf32>
    %32 = arith.maximumf %30, %31 : vector<8x16xf32>
    %33 = vector.extract_strided_slice %0 {offsets = [0, 0], sizes = [8, 16], strides = [1, 1]} : vector<8x32xf32> to vector<8x16xf32>
    %34 = arith.addf %32, %33 : vector<8x16xf32>
    %c0_24 = arith.constant 0 : index
    %c0_25 = arith.constant 0 : index
    %35 = vector.load %arg10[%c0_24, %c0_25] : memref<8x16xf32, #tpu.memory_space<vmem>>, vector<8x16xf32>
    tpu.vector_store %arg10[%c0_24, %c0_25], %34 {strides = array<i32>} : memref<8x16xf32, #tpu.memory_space<vmem>>, vector<8x16xf32>,
    return
  }
  func.func @transform_0(%arg0: i32) -> (i32, i32) {
    %c0_i32 = arith.constant 0 : i32
    %c0_i32_0 = arith.constant 0 : i32
    return %arg0, %c0_i32 : i32, i32
  }
  func.func @transform_1(%arg0: i32) -> (i32, i32) {
    %c0_i32 = arith.constant 0 : i32
    %c0_i32_0 = arith.constant 0 : i32
    %c0_i32_1 = arith.constant 0 : i32
    return %c0_i32, %c0_i32_0 : i32, i32
  }
  func.func @transform_2(%arg0: i32) -> (i32, i32) {
    %c0_i32 = arith.constant 0 : i32
    %c0_i32_0 = arith.constant 0 : i32
    %c0_i32_1 = arith.constant 0 : i32
    return %c0_i32, %c0_i32_0 : i32, i32
  }
  func.func @transform_3(%arg0: i32) -> (i32, i32) {
    %c0_i32 = arith.constant 0 : i32
    %c0_i32_0 = arith.constant 0 : i32
    %c0_i32_1 = arith.constant 0 : i32
    return %c0_i32, %c0_i32_0 : i32, i32
  }
  func.func @transform_4(%arg0: i32) -> (i32, i32) {
    %c0_i32 = arith.constant 0 : i32
    %c0_i32_0 = arith.constant 0 : i32
    %c0_i32_1 = arith.constant 0 : i32
    return %c0_i32, %c0_i32_0 : i32, i32
  }
  func.func @transform_5(%arg0: i32) -> (i32, i32) {
    %c0_i32 = arith.constant 0 : i32
    %c0_i32_0 = arith.constant 0 : i32
    %c0_i32_1 = arith.constant 0 : i32
    return %c0_i32, %c0_i32_0 : i32, i32
  }
  func.func @transform_6(%arg0: i32) -> (i32, i32) {
    %c0_i32 = arith.constant 0 : i32
    %c0_i32_0 = arith.constant 0 : i32
    %c0_i32_1 = arith.constant 0 : i32
    return %c0_i32, %c0_i32_0 : i32, i32
  }
  func.func @transform_7(%arg0: i32) -> (i32, i32) {
    %c0_i32 = arith.constant 0 : i32
    %c0_i32_0 = arith.constant 0 : i32
    %c0_i32_1 = arith.constant 0 : i32
    return %c0_i32, %c0_i32_0 : i32, i32
  }
  func.func @transform_8(%arg0: i32) -> (i32, i32) {
    %c0_i32 = arith.constant 0 : i32
    %c0_i32_0 = arith.constant 0 : i32
    %c0_i32_1 = arith.constant 0 : i32
    return %c0_i32, %c0_i32_0 : i32, i32
  }
  func.func @transform_9(%arg0: i32) -> (i32, i32) {
    %c0_i32 = arith.constant 0 : i32
    %c0_i32_0 = arith.constant 0 : i32
    return %arg0, %c0_i32 : i32, i32
  }
}

</mosaic_0001>

<llo_original>
// kernel: tpu_custom_call.1
$region0: #{tpu_custom_call.1}
  #allocation0 [shape = 'u32[]', space=smem, size = 0x4, offset = 0x4, fixed_abs, tag = 'smem constant byte address 0x4 - core index']
  #allocation1 [shape = 'u32[144,128]{1,0:T(1,128)}', space=vmem, size = 0x12000, scoped, tag = 'internal scratch']
  %s0 = inlined_call_operand.vmem [shape: f32[16,32], index: 0, kind: input, shape index: {}]
  %s1 = inlined_call_operand.hbm [shape: bf16[32,64], index: 1, kind: input, shape index: {}]
  %s2 = inlined_call_operand.vmem [shape: f32[1,64], index: 2, kind: input, shape index: {}]
  %s3 = inlined_call_operand.vmem [shape: bf16[64,64], index: 3, kind: input, shape index: {}]
  %s4 = inlined_call_operand.vmem [shape: f32[1,64], index: 4, kind: input, shape index: {}]
  %s5 = inlined_call_operand.vmem [shape: bf16[64,32], index: 5, kind: input, shape index: {}]
  %s6 = inlined_call_operand.vmem [shape: f32[1,32], index: 6, kind: input, shape index: {}]
  %s7 = inlined_call_operand.vmem [shape: bf16[32,16], index: 7, kind: input, shape index: {}]
  %s8 = inlined_call_operand.vmem [shape: f32[1,16], index: 8, kind: input, shape index: {}]
  %s9 = inlined_call_operand.hbm [shape: f32[16,16], index: 9, kind: output, shape index: {}]
  %s10 = sld [smem:[#allocation0]]
  $region73: #{tpu_custom_call.1} parent=0
    _
  %s12 = ssub.s32 1, %s10
  %s13 = scalar_select 0, %s12, %s10
  $region1: #{tpu_custom_call.1} parent=0
    #allocation2 [shape = 'u8[8192]{0}', space=vmem, size = 0x2000, scoped, tag = 'input window, operand 1, single buffered']
    #allocation3 [shape = 's32[2]{0}', space=sflag, size = 0x8, scoped, tag = 'scoped memory for tpu_custom_call.1']
    #allocation4 [shape = 's32[2]{0}', space=sflag, size = 0x8, scoped, tag = 'scoped memory for tpu_custom_call.1']
    #allocation5 [shape = 'u8[8192]{0}', space=vmem, size = 0x2000, scoped, tag = 'output window, operand 0']
    %14 = vsyncpa [#allocation3], 0
    %15 = vsyncpa [#allocation4], 0
    %s16 = scalar_lea.sflag [#allocation4], 1
    %17 = vsyncpa %s16, 0
    loop: start=0, step=1, limit=4
    $region2: #{tpu_custom_call.1} parent=1 // loop_pre_header
      _
    $region3: #{tpu_custom_call.1} parent=1 // loop_header
      %s19 = sphi 0, %s23
      %p20 = scmp.ge.s32.totalorder %s19, 4
      %s29 = sphi 0, %s31
      %s32 = sphi 0, %s29
      %s33 = sphi 0, %s32
      %s49 = sphi 0, %s33
      %s53 = sphi 0, %s53
      %s55 = sphi 0, %s53
      %s56 = sphi 0, %s55
      %s70 = sphi 0, %s56
      %s74 = sphi 0, %s74
      %s76 = sphi 0, %s74
      %s77 = sphi 0, %s76
      %s91 = sphi 0, %s77
      %s95 = sphi 0, %s95
      %s97 = sphi 0, %s95
      %s98 = sphi 0, %s97
      %s112 = sphi 0, %s98
      %s116 = sphi 0, %s116
      %s118 = sphi 0, %s116
      %s119 = sphi 0, %s118
      %s133 = sphi 0, %s119
      %s137 = sphi 0, %s137
      %s139 = sphi 0, %s137
      %s140 = sphi 0, %s139
      %s154 = sphi 0, %s140
      %s158 = sphi 0, %s158
      %s160 = sphi 0, %s158
      %s161 = sphi 0, %s160
      %s175 = sphi 0, %s161
      %s179 = sphi 0, %s179
      %s181 = sphi 0, %s179
      %s182 = sphi 0, %s181
      %s196 = sphi 0, %s182
      %s200 = sphi 0, %s200
      %s202 = sphi 0, %s200
      %s203 = sphi 0, %s202
      %s217 = sphi 0, %s203
      %s223 = sphi 0, %s225
      %s226 = sphi 0, %s223
      %s227 = sphi 0, %s226
      %s243 = sphi 0, %s227
    $region4: #{tpu_custom_call.1} parent=1 // loop_header_branch
      %22 = sbr.rel (%p20) target = $region8
    $region5: #{tpu_custom_call.1} parent=1 // loop_body
      %s24 = ssub.s32 %s19, 1
      %s25 = ssub.s32 %s19, 2
      %s26 = sadd.s32 %s19, 1
      %s27 = ssub.s32 %s19, %s26
      %p28 = scmp.eq.s32.totalorder %s27, 0
      %s30 = sadd.s32 %s29, 1
      %s31 = scalar_select %p28, %s29, %s30
      %p34 = pneg %p28
      %p35 = scmp.eq.s32.totalorder %s19, 1
      %p36 = por %p34, %p35
      %p37 = scmp.ne.s32.totalorder %s29, %s32
      %p38 = scmp.eq.s32.totalorder %s19, 0
      %p39 = por %p37, %p38
      %p40 = scmp.ne.s32.totalorder %s29, %s32
      %p41 = scmp.eq.s32.totalorder %s24, 1
      %p42 = por %p40, %p41
      %p43 = scmp.ne.s32.totalorder %s32, %s33
      %p44 = scmp.eq.s32.totalorder %s24, 0
      %p45 = por %p43, %p44
      %p46 = scmp.ne.s32.totalorder %s32, %s33
      %p47 = scmp.eq.s32.totalorder %s25, 1
      %p48 = por %p46, %p47
      %p50 = scmp.ne.s32.totalorder %s33, %s49
      %p51 = scmp.eq.s32.totalorder %s25, 0
      %p52 = por %p50, %p51
      %s54 = sadd.s32 %s53, 1
      %p57 = scmp.eq.s32.totalorder %s19, 1
      %p58 = scmp.ne.s32.totalorder %s53, %s55
      %p59 = scmp.eq.s32.totalorder %s19, 0
      %p60 = por %p58, %p59
      %p61 = scmp.ne.s32.totalorder %s53, %s55
      %p62 = scmp.eq.s32.totalorder %s24, 1
      %p63 = por %p61, %p62
      %p64 = scmp.ne.s32.totalorder %s55, %s56
      %p65 = scmp.eq.s32.totalorder %s24, 0
      %p66 = por %p64, %p65
      %p67 = scmp.ne.s32.totalorder %s55, %s56
      %p68 = scmp.eq.s32.totalorder %s25, 1
      %p69 = por %p67, %p68
      %p71 = scmp.ne.s32.totalorder %s56, %s70
      %p72 = scmp.eq.s32.totalorder %s25, 0
      %p73 = por %p71, %p72
      %s75 = sadd.s32 %s74, 1
      %p78 = scmp.eq.s32.totalorder %s19, 1
      %p79 = scmp.ne.s32.totalorder %s74, %s76
      %p80 = scmp.eq.s32.totalorder %s19, 0
      %p81 = por %p79, %p80
      %p82 = scmp.ne.s32.totalorder %s74, %s76
      %p83 = scmp.eq.s32.totalorder %s24, 1
      %p84 = por %p82, %p83
      %p85 = scmp.ne.s32.totalorder %s76, %s77
      %p86 = scmp.eq.s32.totalorder %s24, 0
      %p87 = por %p85, %p86
      %p88 = scmp.ne.s32.totalorder %s76, %s77
      %p89 = scmp.eq.s32.totalorder %s25, 1
      %p90 = por %p88, %p89
      %p92 = scmp.ne.s32.totalorder %s77, %s91
      %p93 = scmp.eq.s32.totalorder %s25, 0
      %p94 = por %p92, %p93
      %s96 = sadd.s32 %s95, 1
      %p99 = scmp.eq.s32.totalorder %s19, 1
      %p100 = scmp.ne.s32.totalorder %s95, %s97
      %p101 = scmp.eq.s32.totalorder %s19, 0
      %p102 = por %p100, %p101
      %p103 = scmp.ne.s32.totalorder %s95, %s97
      %p104 = scmp.eq.s32.totalorder %s24, 1
      %p105 = por %p103, %p104
      %p106 = scmp.ne.s32.totalorder %s97, %s98
      %p107 = scmp.eq.s32.totalorder %s24, 0
      %p108 = por %p106, %p107
      %p109 = scmp.ne.s32.totalorder %s97, %s98
      %p110 = scmp.eq.s32.totalorder %s25, 1
      %p111 = por %p109, %p110
      %p113 = scmp.ne.s32.totalorder %s98, %s112
      %p114 = scmp.eq.s32.totalorder %s25, 0
      %p115 = por %p113, %p114
      %s117 = sadd.s32 %s116, 1
      %p120 = scmp.eq.s32.totalorder %s19, 1
      %p121 = scmp.ne.s32.totalorder %s116, %s118
      %p122 = scmp.eq.s32.totalorder %s19, 0
      %p123 = por %p121, %p122
      %p124 = scmp.ne.s32.totalorder %s116, %s118
      %p125 = scmp.eq.s32.totalorder %s24, 1
      %p126 = por %p124, %p125
      %p127 = scmp.ne.s32.totalorder %s118, %s119
      %p128 = scmp.eq.s32.totalorder %s24, 0
      %p129 = por %p127, %p128
      %p130 = scmp.ne.s32.totalorder %s118, %s119
      %p131 = scmp.eq.s32.totalorder %s25, 1
      %p132 = por %p130, %p131
      %p134 = scmp.ne.s32.totalorder %s119, %s133
      %p135 = scmp.eq.s32.totalorder %s25, 0
      %p136 = por %p134, %p135
      %s138 = sadd.s32 %s137, 1
      %p141 = scmp.eq.s32.totalorder %s19, 1
      %p142 = scmp.ne.s32.totalorder %s137, %s139
      %p143 = scmp.eq.s32.totalorder %s19, 0
      %p144 = por %p142, %p143
      %p145 = scmp.ne.s32.totalorder %s137, %s139
      %p146 = scmp.eq.s32.totalorder %s24, 1
      %p147 = por %p145, %p146
      %p148 = scmp.ne.s32.totalorder %s139, %s140
      %p149 = scmp.eq.s32.totalorder %s24, 0
      %p150 = por %p148, %p149
      %p151 = scmp.ne.s32.totalorder %s139, %s140
      %p152 = scmp.eq.s32.totalorder %s25, 1
      %p153 = por %p151, %p152
      %p155 = scmp.ne.s32.totalorder %s140, %s154
      %p156 = scmp.eq.s32.totalorder %s25, 0
      %p157 = por %p155, %p156
      %s159 = sadd.s32 %s158, 1
      %p162 = scmp.eq.s32.totalorder %s19, 1
      %p163 = scmp.ne.s32.totalorder %s158, %s160
      %p164 = scmp.eq.s32.totalorder %s19, 0
      %p165 = por %p163, %p164
      %p166 = scmp.ne.s32.totalorder %s158, %s160
      %p167 = scmp.eq.s32.totalorder %s24, 1
      %p168 = por %p166, %p167
      %p169 = scmp.ne.s32.totalorder %s160, %s161
      %p170 = scmp.eq.s32.totalorder %s24, 0
      %p171 = por %p169, %p170
      %p172 = scmp.ne.s32.totalorder %s160, %s161
      %p173 = scmp.eq.s32.totalorder %s25, 1
      %p174 = por %p172, %p173
      %p176 = scmp.ne.s32.totalorder %s161, %s175
      %p177 = scmp.eq.s32.totalorder %s25, 0
      %p178 = por %p176, %p177
      %s180 = sadd.s32 %s179, 1
      %p183 = scmp.eq.s32.totalorder %s19, 1
      %p184 = scmp.ne.s32.totalorder %s179, %s181
      %p185 = scmp.eq.s32.totalorder %s19, 0
      %p186 = por %p184, %p185
      %p187 = scmp.ne.s32.totalorder %s179, %s181
      %p188 = scmp.eq.s32.totalorder %s24, 1
      %p189 = por %p187, %p188
      %p190 = scmp.ne.s32.totalorder %s181, %s182
      %p191 = scmp.eq.s32.totalorder %s24, 0
      %p192 = por %p190, %p191
      %p193 = scmp.ne.s32.totalorder %s181, %s182
      %p194 = scmp.eq.s32.totalorder %s25, 1
      %p195 = por %p193, %p194
      %p197 = scmp.ne.s32.totalorder %s182, %s196
      %p198 = scmp.eq.s32.totalorder %s25, 0
      %p199 = por %p197, %p198
      %s201 = sadd.s32 %s200, 1
      %p204 = scmp.eq.s32.totalorder %s19, 1
      %p205 = scmp.ne.s32.totalorder %s200, %s202
      %p206 = scmp.eq.s32.totalorder %s19, 0
      %p207 = por %p205, %p206
      %p208 = scmp.ne.s32.totalorder %s200, %s202
      %p209 = scmp.eq.s32.totalorder %s24, 1
      %p210 = por %p208, %p209
      %p211 = scmp.ne.s32.totalorder %s202, %s203
      %p212 = scmp.eq.s32.totalorder %s24, 0
      %p213 = por %p211, %p212
      %p214 = scmp.ne.s32.totalorder %s202, %s203
      %p215 = scmp.eq.s32.totalorder %s25, 1
      %p216 = por %p214, %p215
      %p218 = scmp.ne.s32.totalorder %s203, %s217
      %p219 = scmp.eq.s32.totalorder %s25, 0
      %p220 = por %p218, %p219
      %s221 = ssub.s32 %s19, %s26
      %p222 = scmp.eq.s32.totalorder %s221, 0
      %s224 = sadd.s32 %s223, 1
      %s225 = scalar_select %p222, %s223, %s224
      %p228 = pneg %p222
      %p229 = scmp.eq.s32.totalorder %s19, 1
      %p230 = por %p228, %p229
      %p231 = scmp.ne.s32.totalorder %s223, %s226
      %p232 = scmp.eq.s32.totalorder %s19, 0
      %p233 = por %p231, %p232
      %p234 = scmp.ne.s32.totalorder %s223, %s226
      %p235 = scmp.eq.s32.totalorder %s24, 1
      %p236 = por %p234, %p235
      %p237 = scmp.ne.s32.totalorder %s226, %s227
      %p238 = scmp.eq.s32.totalorder %s24, 0
      %p239 = por %p237, %p238
      %p240 = scmp.ne.s32.totalorder %s226, %s227
      %p241 = scmp.eq.s32.totalorder %s25, 1
      %p242 = por %p240, %p241
      %p244 = scmp.ne.s32.totalorder %s227, %s243
      %p245 = scmp.eq.s32.totalorder %s25, 0
      %p246 = por %p244, %p245
      %p247 = scmp.le.s32.totalorder 1, %s19
      %p248 = scmp.lt.s32.totalorder %s19, 3
      %p249 = pnand %p247, %p248
      %p250 = pneg %p249
      // Predicated region
      $region9: #{tpu_custom_call.1} parent=5 // pred_check
        _
      $region10: #{tpu_custom_call.1} parent=5 // pred_check_branch
        %252 = sbr.rel (%p249) target = $region12
      $region11: #{tpu_custom_call.1} parent=5 // pred_region
        %s253 = ssub.s32 %s19, 1
        // Predicated region
        $region13: #{tpu_custom_call.1} parent=11 // pred_check
          %p254 = pneg %p66
        $region14: #{tpu_custom_call.1} parent=11 // pred_check_branch
          %256 = sbr.rel (%p254) target = $region16
        $region15: #{tpu_custom_call.1} parent=11 // pred_region
          %s258 = ssub.s32 256, 256
          %259 = vsyncadd [#allocation3], %s258
          %s260 = sshll.u32 [#allocation2], 4
          %s261 = int_to_ptr.vmem [resolvable:$true] %s260
          %266 = dma.hbm_to_vmem [thread:$0]  %s1, 256, %s261, [#allocation3], 64, 64, 4
        $region16: #{tpu_custom_call.1} parent=11 // pred_fallthru
          _
        // Predicated region
        $region17: #{tpu_custom_call.1} parent=11 // pred_check
          %p267 = pneg %p87
        $region18: #{tpu_custom_call.1} parent=11 // pred_check_branch
          %269 = sbr.rel (%p267) target = $region20
        $region19: #{tpu_custom_call.1} parent=11 // pred_region
          _
        $region20: #{tpu_custom_call.1} parent=11 // pred_fallthru
          _
        // Predicated region
        $region21: #{tpu_custom_call.1} parent=11 // pred_check
          %p270 = pneg %p108
        $region22: #{tpu_custom_call.1} parent=11 // pred_check_branch
          %272 = sbr.rel (%p270) target = $region24
        $region23: #{tpu_custom_call.1} parent=11 // pred_region
          _
        $region24: #{tpu_custom_call.1} parent=11 // pred_fallthru
          _
        // Predicated region
        $region25: #{tpu_custom_call.1} parent=11 // pred_check
          %p273 = pneg %p129
        $region26: #{tpu_custom_call.1} parent=11 // pred_check_branch
          %275 = sbr.rel (%p273) target = $region28
        $region27: #{tpu_custom_call.1} parent=11 // pred_region
          _
        $region28: #{tpu_custom_call.1} parent=11 // pred_fallthru
          _
        // Predicated region
        $region29: #{tpu_custom_call.1} parent=11 // pred_check
          %p276 = pneg %p150
        $region30: #{tpu_custom_call.1} parent=11 // pred_check_branch
          %278 = sbr.rel (%p276) target = $region32
        $region31: #{tpu_custom_call.1} parent=11 // pred_region
          _
        $region32: #{tpu_custom_call.1} parent=11 // pred_fallthru
          _
        // Predicated region
        $region33: #{tpu_custom_call.1} parent=11 // pred_check
          %p279 = pneg %p171
        $region34: #{tpu_custom_call.1} parent=11 // pred_check_branch
          %281 = sbr.rel (%p279) target = $region36
        $region35: #{tpu_custom_call.1} parent=11 // pred_region
          _
        $region36: #{tpu_custom_call.1} parent=11 // pred_fallthru
          _
        // Predicated region
        $region37: #{tpu_custom_call.1} parent=11 // pred_check
          %p282 = pneg %p192
        $region38: #{tpu_custom_call.1} parent=11 // pred_check_branch
          %284 = sbr.rel (%p282) target = $region40
        $region39: #{tpu_custom_call.1} parent=11 // pred_region
          _
        $region40: #{tpu_custom_call.1} parent=11 // pred_fallthru
          _
        // Predicated region
        $region41: #{tpu_custom_call.1} parent=11 // pred_check
          %p285 = pneg %p213
        $region42: #{tpu_custom_call.1} parent=11 // pred_check_branch
          %287 = sbr.rel (%p285) target = $region44
        $region43: #{tpu_custom_call.1} parent=11 // pred_region
          _
        $region44: #{tpu_custom_call.1} parent=11 // pred_fallthru
          _
      $region12: #{tpu_custom_call.1} parent=5 // pred_fallthru
        _
      %p288 = scmp.lt.s32.totalorder %s19, 2
      // Predicated region
      $region45: #{tpu_custom_call.1} parent=5 // pred_check
        %p289 = pneg %p288
      $region46: #{tpu_custom_call.1} parent=5 // pred_check_branch
        %291 = sbr.rel (%p289) target = $region48
      $region47: #{tpu_custom_call.1} parent=5 // pred_region
        // Predicated region
        $region49: #{tpu_custom_call.1} parent=47 // pred_check
          %p292 = pneg %p39
        $region50: #{tpu_custom_call.1} parent=47 // pred_check_branch
          %294 = sbr.rel (%p292) target = $region52
        $region51: #{tpu_custom_call.1} parent=47 // pred_region
          %p295 = scmp.lt.s32.totalorder %s19, 1
          %s296 = scalar_select %p295, %s19, 1
          %s297 = smul.addr %s296, 8
          %s298 = scalar_lea.vmem %s0, %s297
        $region52: #{tpu_custom_call.1} parent=47 // pred_fallthru
          _
      $region48: #{tpu_custom_call.1} parent=5 // pred_fallthru
        _
      %p299 = scmp.le.s32.totalorder 1, %s19
      %p300 = scmp.lt.s32.totalorder %s19, 3
      %p301 = pnand %p299, %p300
      %p302 = pneg %p301
      // Predicated region
      $region53: #{tpu_custom_call.1} parent=5 // pred_check
        _
      $region54: #{tpu_custom_call.1} parent=5 // pred_check_branch
        %304 = sbr.rel (%p301) target = $region56
      $region55: #{tpu_custom_call.1} parent=5 // pred_region
        %s305 = ssub.s32 %s19, 1
        // Predicated region
        $region57: #{tpu_custom_call.1} parent=55 // pred_check
          %p306 = pneg %p66
        $region58: #{tpu_custom_call.1} parent=55 // pred_check_branch
          %308 = sbr.rel (%p306) target = $region60
        $region59: #{tpu_custom_call.1} parent=55 // pred_region
          %309 = dma.done [#allocation3], 256
        $region60: #{tpu_custom_call.1} parent=55 // pred_fallthru
          _
        %p310 = scmp.lt.s32.totalorder %s24, 1
        %s311 = scalar_select %p310, %s24, 1
        %s312 = smul.addr %s311, 8
        %s313 = scalar_lea.vmem %s0, %s312
        %p314 = pneg %p45
        %p315 = pneg %p42
        %p316 = pneg %p66
        %p317 = pneg %p63
        %p318 = pneg %p87
        %p319 = pneg %p84
        %p320 = pneg %p108
        %p321 = pneg %p105
        %p322 = pneg %p129
        %p323 = pneg %p126
        %p324 = pneg %p150
        %p325 = pneg %p147
        %p326 = pneg %p171
        %p327 = pneg %p168
        %p328 = pneg %p192
        %p329 = pneg %p189
        %p330 = pneg %p213
        %p331 = pneg %p210
        %p332 = pneg %p239
        %p333 = pneg %p236
        %s334 = sand.u32 %s226, 1
        %s335 = scalar_lea.sflag [#allocation4], %s334
        %s336 = sand.u32 %s226, 1
        %s337 = smul.addr %s336, 8
        %s338 = scalar_lea.vmem [#allocation5], %s337
        %p339 = scmp.lt.s32.totalorder %s24, 1
        %s340 = scalar_select %p339, %s24, 1
        %s341 = smul.addr %s340, 8
        %s342 = scalar_lea.vmem %s0, %s341
        %v344 = vld [vmem:[%s342] sm:$0xff]
        %v345 = vpack.c.bf16 %v344, %v344
        %v346 = vld [vmem:[#allocation2] sm:$0xf]
        %v347 = vld [vmem:[#allocation2 + $0x4] sm:$0xf]
        %v348 = vld [vmem:[#allocation2 + $0x8] sm:$0xf]
        %v349 = vld [vmem:[#allocation2 + $0xc] sm:$0xf]
        %v350 = vld [vmem:[%s2] sm:$0x1]
        %v352 = vlaneseq
        %v353 = vshrl.u32 %v352, 7
        %v354 = vsub.s32 0, %v353
        %v355 = vrot.slane %v350, %v354
        %v361 = vunpack.c.l.b16 %v346
        %v362 = vunpack.c.l.b16 %v347
        %v363 = vunpack.c.l.b16 %v348
        %v364 = vunpack.c.l.b16 %v349
        %v365 = vpack.c.b16 %v362, %v361
        %v366 = vpack.c.b16 %v364, %v363
        %vm369 = vcmask 261120
        %v371 = vsel %vm369, %v345, 0
        %373 = vmatprep.subr.bf16.mxu0 0
        %374 = vmatpush1.bf16.msra.mxu0 %v365
        %375 = vmatprep.subr.bf16.mxu0 0
        %376 = vmatpush1.bf16.msra.mxu0 %v366
        %377 = vmatprep.subr.bf16.mxu0 0
        %378 = vmatpush1.bf16.msra.mxu0 0
        %379 = vmatprep.subr.bf16.mxu0 0
        %380 = vmatpush1.bf16.msra.mxu0 0
        %381 = vmatprep.subr.bf16.mxu0 0
        %382 = vmatpush1.bf16.msra.mxu0 0
        %383 = vmatprep.subr.bf16.mxu0 0
        %384 = vmatpush1.bf16.msra.mxu0 0
        %385 = vmatprep.subr.bf16.mxu0 0
        %386 = vmatpush1.bf16.msra.mxu0 0
        %387 = vmatprep.subr.bf16.mxu0 0
        %388 = vmatpush1.bf16.msra.mxu0 0
        %389 = vmatprep.subr.bf16.mxu0 0
        %390 = vmatpush1.bf16.msra.mxu0 0
        %391 = vmatprep.subr.bf16.mxu0 0
        %392 = vmatpush1.bf16.msra.mxu0 0
        %393 = vmatprep.subr.bf16.mxu0 0
        %394 = vmatpush1.bf16.msra.mxu0 0
        %395 = vmatprep.subr.bf16.mxu0 0
        %396 = vmatpush1.bf16.msra.mxu0 0
        %397 = vmatprep.subr.bf16.mxu0 0
        %398 = vmatpush1.bf16.msra.mxu0 0
        %399 = vmatprep.subr.bf16.mxu0 0
        %400 = vmatpush1.bf16.msra.mxu0 0
        %401 = vmatprep.subr.bf16.mxu0 0
        %402 = vmatpush1.bf16.msra.mxu0 0
        %403 = vmatprep.subr.bf16.mxu0 0
        %404 = vmatpush1.bf16.msra.mxu0 0
        %405 = vmatprep.mubr.bf16.mxu0 0
        %406 = vmatmul.mubr.bf16.gmra.mrb[0].mxu0 %v371
        %v407 = vpop.f32.mrb[0].mxu0
        %v408 = vadd.f32 %v355, %v407
        %v409 = vpop.f32.mrb[0].mxu0
        %v410 = vpop.f32.mrb[0].mxu0
        %v411 = vpop.f32.mrb[0].mxu0
        %412 = vdwg.mxu0
        %v413 = vmax.f32 %v408, 0.0
        %v414 = vpack.c.bf16 %v413, %v413
        %v415 = vld [vmem:[%s3] sm:$0xf]
        %v416 = vld [vmem:[%s3 + $0x4] sm:$0xf]
        %v417 = vld [vmem:[%s3 + $0x8] sm:$0xf]
        %v418 = vld [vmem:[%s3 + $0xc] sm:$0xf]
        %v419 = vld [vmem:[%s3 + $0x10] sm:$0xf]
        %v420 = vld [vmem:[%s3 + $0x14] sm:$0xf]
        %v421 = vld [vmem:[%s3 + $0x18] sm:$0xf]
        %v422 = vld [vmem:[%s3 + $0x1c] sm:$0xf]
        %v423 = vld [vmem:[%s4] sm:$0x1]
        %v425 = vlaneseq
        %v426 = vshrl.u32 %v425, 7
        %v427 = vsub.s32 0, %v426
        %v428 = vrot.slane %v423, %v427
        %v438 = vunpack.c.l.b16 %v415
        %v439 = vunpack.c.l.b16 %v416
        %v440 = vunpack.c.l.b16 %v417
        %v441 = vunpack.c.l.b16 %v418
        %v442 = vunpack.c.l.b16 %v419
        %v443 = vunpack.c.l.b16 %v420
        %v444 = vunpack.c.l.b16 %v421
        %v445 = vunpack.c.l.b16 %v422
        %v446 = vpack.c.b16 %v439, %v438
        %v447 = vpack.c.b16 %v441, %v440
        %v448 = vpack.c.b16 %v443, %v442
        %v449 = vpack.c.b16 %v445, %v444
        %vm454 = vcmask 523264
        %v456 = vsel %vm454, %v414, 0
        %458 = vmatprep.subr.bf16.mxu0 0
        %459 = vmatpush1.bf16.msra.mxu0 %v446
        %460 = vmatprep.subr.bf16.mxu0 0
        %461 = vmatpush1.bf16.msra.mxu0 %v447
        %462 = vmatprep.subr.bf16.mxu0 0
        %463 = vmatpush1.bf16.msra.mxu0 %v448
        %464 = vmatprep.subr.bf16.mxu0 0
        %465 = vmatpush1.bf16.msra.mxu0 %v449
        %466 = vmatprep.subr.bf16.mxu0 0
        %467 = vmatpush1.bf16.msra.mxu0 0
        %468 = vmatprep.subr.bf16.mxu0 0
        %469 = vmatpush1.bf16.msra.mxu0 0
        %470 = vmatprep.subr.bf16.mxu0 0
        %471 = vmatpush1.bf16.msra.mxu0 0
        %472 = vmatprep.subr.bf16.mxu0 0
        %473 = vmatpush1.bf16.msra.mxu0 0
        %474 = vmatprep.subr.bf16.mxu0 0
        %475 = vmatpush1.bf16.msra.mxu0 0
        %476 = vmatprep.subr.bf16.mxu0 0
        %477 = vmatpush1.bf16.msra.mxu0 0
        %478 = vmatprep.subr.bf16.mxu0 0
        %479 = vmatpush1.bf16.msra.mxu0 0
        %480 = vmatprep.subr.bf16.mxu0 0
        %481 = vmatpush1.bf16.msra.mxu0 0
        %482 = vmatprep.subr.bf16.mxu0 0
        %483 = vmatpush1.bf16.msra.mxu0 0
        %484 = vmatprep.subr.bf16.mxu0 0
        %485 = vmatpush1.bf16.msra.mxu0 0
        %486 = vmatprep.subr.bf16.mxu0 0
        %487 = vmatpush1.bf16.msra.mxu0 0
        %488 = vmatprep.subr.bf16.mxu0 0
        %489 = vmatpush1.bf16.msra.mxu0 0
        %490 = vmatprep.mubr.bf16.mxu0 0
        %491 = vmatmul.mubr.bf16.gmra.mrb[0].mxu0 %v456
        %v492 = vpop.f32.mrb[0].mxu0
        %v493 = vadd.f32 %v428, %v492
        %v494 = vpop.f32.mrb[0].mxu0
        %v495 = vpop.f32.mrb[0].mxu0
        %v496 = vpop.f32.mrb[0].mxu0
        %497 = vdwg.mxu0
        %v498 = vmax.f32 %v493, 0.0
        %v499 = vpack.c.bf16 %v498, %v498
        %v500 = vld [vmem:[%s5] sm:$0xf]
        %v501 = vld [vmem:[%s5 + $0x4] sm:$0xf]
        %v502 = vld [vmem:[%s5 + $0x8] sm:$0xf]
        %v503 = vld [vmem:[%s5 + $0xc] sm:$0xf]
        %v504 = vld [vmem:[%s5 + $0x10] sm:$0xf]
        %v505 = vld [vmem:[%s5 + $0x14] sm:$0xf]
        %v506 = vld [vmem:[%s5 + $0x18] sm:$0xf]
        %v507 = vld [vmem:[%s5 + $0x1c] sm:$0xf]
        %v508 = vld [vmem:[%s6] sm:$0x1]
        %v510 = vlaneseq
        %v511 = vshrl.u32 %v510, 7
        %v512 = vsub.s32 0, %v511
        %v513 = vrot.slane %v508, %v512
        %v523 = vunpack.c.l.b16 %v500
        %v524 = vunpack.c.l.b16 %v501
        %v525 = vunpack.c.l.b16 %v502
        %v526 = vunpack.c.l.b16 %v503
        %v527 = vunpack.c.l.b16 %v504
        %v528 = vunpack.c.l.b16 %v505
        %v529 = vunpack.c.l.b16 %v506
        %v530 = vunpack.c.l.b16 %v507
        %v531 = vpack.c.b16 %v524, %v523
        %v532 = vpack.c.b16 %v526, %v525
        %v533 = vpack.c.b16 %v528, %v527
        %v534 = vpack.c.b16 %v530, %v529
        %v540 = vsel %vm454, %v499, 0
        %542 = vmatprep.subr.bf16.mxu0 0
        %543 = vmatpush1.bf16.msra.mxu0 %v531
        %544 = vmatprep.subr.bf16.mxu0 0
        %545 = vmatpush1.bf16.msra.mxu0 %v532
        %546 = vmatprep.subr.bf16.mxu0 0
        %547 = vmatpush1.bf16.msra.mxu0 %v533
        %548 = vmatprep.subr.bf16.mxu0 0
        %549 = vmatpush1.bf16.msra.mxu0 %v534
        %550 = vmatprep.subr.bf16.mxu0 0
        %551 = vmatpush1.bf16.msra.mxu0 0
        %552 = vmatprep.subr.bf16.mxu0 0
        %553 = vmatpush1.bf16.msra.mxu0 0
        %554 = vmatprep.subr.bf16.mxu0 0
        %555 = vmatpush1.bf16.msra.mxu0 0
        %556 = vmatprep.subr.bf16.mxu0 0
        %557 = vmatpush1.bf16.msra.mxu0 0
        %558 = vmatprep.subr.bf16.mxu0 0
        %559 = vmatpush1.bf16.msra.mxu0 0
        %560 = vmatprep.subr.bf16.mxu0 0
        %561 = vmatpush1.bf16.msra.mxu0 0
        %562 = vmatprep.subr.bf16.mxu0 0
        %563 = vmatpush1.bf16.msra.mxu0 0
        %564 = vmatprep.subr.bf16.mxu0 0
        %565 = vmatpush1.bf16.msra.mxu0 0
        %566 = vmatprep.subr.bf16.mxu0 0
        %567 = vmatpush1.bf16.msra.mxu0 0
        %568 = vmatprep.subr.bf16.mxu0 0
        %569 = vmatpush1.bf16.msra.mxu0 0
        %570 = vmatprep.subr.bf16.mxu0 0
        %571 = vmatpush1.bf16.msra.mxu0 0
        %572 = vmatprep.subr.bf16.mxu0 0
        %573 = vmatpush1.bf16.msra.mxu0 0
        %574 = vmatprep.mubr.bf16.mxu0 0
        %575 = vmatmul.mubr.bf16.gmra.mrb[0].mxu0 %v540
        %v576 = vpop.f32.mrb[0].mxu0
        %v577 = vadd.f32 %v513, %v576
        %v578 = vpop.f32.mrb[0].mxu0
        %v579 = vpop.f32.mrb[0].mxu0
        %v580 = vpop.f32.mrb[0].mxu0
        %581 = vdwg.mxu0
        %v582 = vmax.f32 %v577, 0.0
        %v583 = vpack.c.bf16 %v582, %v582
        %v584 = vld [vmem:[%s7] sm:$0xf]
        %v585 = vld [vmem:[%s7 + $0x4] sm:$0xf]
        %v586 = vld [vmem:[%s7 + $0x8] sm:$0xf]
        %v587 = vld [vmem:[%s7 + $0xc] sm:$0xf]
        %v588 = vld [vmem:[%s8] sm:$0x1]
        %v590 = vlaneseq
        %v591 = vshrl.u32 %v590, 7
        %v592 = vsub.s32 0, %v591
        %v593 = vrot.slane %v588, %v592
        %v599 = vunpack.c.l.b16 %v584
        %v600 = vunpack.c.l.b16 %v585
        %v601 = vunpack.c.l.b16 %v586
        %v602 = vunpack.c.l.b16 %v587
        %v603 = vpack.c.b16 %v600, %v599
        %v604 = vpack.c.b16 %v602, %v601
        %v608 = vsel %vm369, %v583, 0
        %610 = vmatprep.subr.bf16.mxu0 0
        %611 = vmatpush1.bf16.msra.mxu0 %v603
        %612 = vmatprep.subr.bf16.mxu0 0
        %613 = vmatpush1.bf16.msra.mxu0 %v604
        %614 = vmatprep.subr.bf16.mxu0 0
        %615 = vmatpush1.bf16.msra.mxu0 0
        %616 = vmatprep.subr.bf16.mxu0 0
        %617 = vmatpush1.bf16.msra.mxu0 0
        %618 = vmatprep.subr.bf16.mxu0 0
        %619 = vmatpush1.bf16.msra.mxu0 0
        %620 = vmatprep.subr.bf16.mxu0 0
        %621 = vmatpush1.bf16.msra.mxu0 0
        %622 = vmatprep.subr.bf16.mxu0 0
        %623 = vmatpush1.bf16.msra.mxu0 0
        %624 = vmatprep.subr.bf16.mxu0 0
        %625 = vmatpush1.bf16.msra.mxu0 0
        %626 = vmatprep.subr.bf16.mxu0 0
        %627 = vmatpush1.bf16.msra.mxu0 0
        %628 = vmatprep.subr.bf16.mxu0 0
        %629 = vmatpush1.bf16.msra.mxu0 0
        %630 = vmatprep.subr.bf16.mxu0 0
        %631 = vmatpush1.bf16.msra.mxu0 0
        %632 = vmatprep.subr.bf16.mxu0 0
        %633 = vmatpush1.bf16.msra.mxu0 0
        %634 = vmatprep.subr.bf16.mxu0 0
        %635 = vmatpush1.bf16.msra.mxu0 0
        %636 = vmatprep.subr.bf16.mxu0 0
        %637 = vmatpush1.bf16.msra.mxu0 0
        %638 = vmatprep.subr.bf16.mxu0 0
        %639 = vmatpush1.bf16.msra.mxu0 0
        %640 = vmatprep.subr.bf16.mxu0 0
        %641 = vmatpush1.bf16.msra.mxu0 0
        %642 = vmatprep.mubr.bf16.mxu0 0
        %643 = vmatmul.mubr.bf16.gmra.mrb[0].mxu0 %v608
        %v644 = vpop.f32.mrb[0].mxu0
        %v645 = vadd.f32 %v593, %v644
        %v646 = vpop.f32.mrb[0].mxu0
        %v647 = vpop.f32.mrb[0].mxu0
        %v648 = vpop.f32.mrb[0].mxu0
        %649 = vdwg.mxu0
        %v650 = vmax.f32 %v645, 0.0
        %v651 = vadd.f32 %v650, %v344
        %vm652 = vcmask 130048
        %653 = vst.msk [vmem:[%s338] sm:$0xff] %vm652, %v651
        %s654 = sand.u32 %s226, 1
        %s655 = scalar_lea.sflag [#allocation4], %s654
        %s656 = sand.u32 %s226, 1
        %s657 = smul.addr %s656, 8
        %s658 = scalar_lea.vmem [#allocation5], %s657
        // Predicated region
        $region61: #{tpu_custom_call.1} parent=55 // pred_check
          %p659 = pneg %p236
        $region62: #{tpu_custom_call.1} parent=55 // pred_check_branch
          %661 = sbr.rel (%p659) target = $region64
        $region63: #{tpu_custom_call.1} parent=55 // pred_region
          %s663 = ssub.s32 128, 128
          %664 = vsyncadd %s655, %s663
          %s665 = smul.addr %s24, 128
          %s666 = scalar_lea.hbm %s9, %s665
          %s668 = sshll.u32 %s658, 4
          %s669 = int_to_ptr.vmem [resolvable:$true] %s668
          %671 = dma.vmem_to_hbm [thread:$0]  %s669, 128, %s666, %s655
        $region64: #{tpu_custom_call.1} parent=55 // pred_fallthru
          _
      $region56: #{tpu_custom_call.1} parent=5 // pred_fallthru
        _
      %p672 = scmp.le.s32.totalorder 2, %s19
      // Predicated region
      $region65: #{tpu_custom_call.1} parent=5 // pred_check
        %p673 = pneg %p672
      $region66: #{tpu_custom_call.1} parent=5 // pred_check_branch
        %675 = sbr.rel (%p673) target = $region68
      $region67: #{tpu_custom_call.1} parent=5 // pred_region
        %s676 = ssub.s32 %s19, 2
        // Predicated region
        $region69: #{tpu_custom_call.1} parent=67 // pred_check
          %p677 = pneg %p242
        $region70: #{tpu_custom_call.1} parent=67 // pred_check_branch
          %679 = sbr.rel (%p677) target = $region72
        $region71: #{tpu_custom_call.1} parent=67 // pred_region
          %s680 = sand.u32 %s227, 1
          %s681 = scalar_lea.sflag [#allocation4], %s680
          %s682 = sand.u32 %s227, 1
          %s683 = smul.addr %s682, 8
          %s684 = scalar_lea.vmem [#allocation5], %s683
          %685 = dma.done %s681, 128
        $region72: #{tpu_custom_call.1} parent=67 // pred_fallthru
          _
      $region68: #{tpu_custom_call.1} parent=5 // pred_fallthru
        _
    $region6: #{tpu_custom_call.1} parent=1 // loop_footer
      %s23 = sadd.s32 1, %s19
    $region7: #{tpu_custom_call.1} parent=1 // loop_footer_branch
      %18 = sbr.rel target = $region3
    $region8: #{tpu_custom_call.1} parent=1 // loop_exit
      _
    %686 = vsyncpa [#allocation3], 1
    %s687 = scalar_lea.sflag [#allocation3], 1
    %688 = vsyncpa %s687, 1
    %689 = vsyncpa [#allocation4], 1
    %s690 = scalar_lea.sflag [#allocation4], 1
    %691 = vsyncpa %s690, 1

</llo_original>
